<compile_context>
chip_gen: v7x
topology: tpu7x:2x2x1
jax: 0.10.0
libtpu: 0.0.40
codegen_flags: <defaults>
</compile_context>

<pallas_src>
import functools

import jax
import jax.numpy as jnp
from jax.experimental import pallas as pl
from jax.experimental.pallas import tpu as pltpu

LANE = 128          # lane (last-dim) tiling
BF16_SUBLANES = 16  # bf16 packs 2 rows per sublane -> pad batch to 16


def _round_up(n: int, m: int) -> int:
    return ((n + m - 1) // m) * m


def _fused_mlp_kernel(x_ref, w_ref, b_ref, o_ref, h_scr, *, num_layers: int):
    """Whole MLP forward in a single gridless invocation.

    x_ref : (B, D_in)    f32   unpadded input activations
    w_ref : (L, Dp, Dp)  bf16  stacked, transposed, zero-padded weights
    b_ref : (L, 1, Dp)   f32   stacked, zero-padded biases
    o_ref : (B, D_out)   f32   unpadded Q-values
    h_scr : (Bp, Dp)     f32   VMEM scratch used to zero-pad the input
    """
    b_true, d_in = x_ref.shape
    # Zero-pad x into the scratch: padded lanes/sublanes stay exactly zero so
    # they are inert through every (zero-padded) layer and the ReLUs.
    h_scr[...] = jnp.zeros_like(h_scr)
    h_scr[:b_true, :d_in] = x_ref[...]
    h = h_scr[...]                                    # (Bp, Dp) f32
    for layer in range(num_layers):                   # statically unrolled
        h = (
            jnp.dot(h.astype(jnp.bfloat16), w_ref[layer],
                    preferred_element_type=jnp.float32)
            + b_ref[layer]
        )
        if layer < num_layers - 1:
            h = jnp.maximum(h, 0.0)                   # ReLU on hidden layers only
    # TODO(synk): optionally fuse the acting-loop argmax here (mask lanes >=
    # out_dim with -inf, emit an int32 action) to skip a separate XLA dispatch.
    o_ref[...] = h[:b_true, : o_ref.shape[1]].astype(o_ref.dtype)


@functools.partial(jax.jit, static_argnames=("out_dim",))
def mlp_forward(w_stack, b_stack, x, *, out_dim):
    """Functional jitted forward: one pallas_call, no wrapper pad/slice ops."""
    x = x.astype(jnp.float32)
    batch = x.shape[0]
    num_layers, d_pad, _ = w_stack.shape
    b_pad = _round_up(batch, BF16_SUBLANES)
    kernel = functools.partial(_fused_mlp_kernel, num_layers=num_layers)
    return pl.pallas_call(
        kernel,
        out_shape=jax.ShapeDtypeStruct((batch, out_dim), jnp.float32),
        in_specs=[pl.BlockSpec(memory_space=pltpu.MemorySpace.VMEM)] * 3,
        out_specs=pl.BlockSpec(memory_space=pltpu.MemorySpace.VMEM),
        scratch_shapes=[pltpu.VMEM((b_pad, d_pad), jnp.float32)],
    )(x, w_stack, b_stack)


class LinearQNetPallas:
    """JAX/Pallas equivalent of the PyTorch Linear_QNet module."""

    def __init__(self, neuron_tuple, key):
        self.neuron_tuple = tuple(int(n) for n in neuron_tuple)
        self.out_dim = self.neuron_tuple[-1]
        num_layers = len(self.neuron_tuple) - 1
        # One uniform padded width so all layers stack into a single array.
        d_pad = max(_round_up(d, LANE) for d in self.neuron_tuple)

        self.params = []  # unpadded f32 master copies: (W_t (din,dout), b (dout,))
        w_stack = jnp.zeros((num_layers, d_pad, d_pad), jnp.bfloat16)
        b_stack = jnp.zeros((num_layers, 1, d_pad), jnp.float32)
        for layer in range(num_layers):
            din = self.neuron_tuple[layer]
            dout = self.neuron_tuple[layer + 1]
            key, kw, kb = jax.random.split(key, 3)
            # PyTorch nn.Linear default init: U(-1/sqrt(in), 1/sqrt(in))
            bound = 1.0 / (din ** 0.5)
            w = jax.random.uniform(kw, (dout, din), jnp.float32, -bound, bound)
            b = jax.random.uniform(kb, (dout,), jnp.float32, -bound, bound)
            w_t = w.T  # (din, dout): y = x @ W.T + b
            self.params.append((w_t, b))
            w_stack = w_stack.at[layer, :din, :dout].set(w_t.astype(jnp.bfloat16))
            b_stack = b_stack.at[layer, 0, :dout].set(b)
        self.w_stack = w_stack
        self.b_stack = b_stack

    def __call__(self, x):
        return mlp_forward(self.w_stack, self.b_stack, x, out_dim=self.out_dim)

    # TODO(synk): Linear_QNet.save (torch.save of state_dict) is checkpoint I/O,
    # not a kernel op; omitted here.


def _reference_forward_f32(params, x):
    """Pure-f32 reference matching the PyTorch forward exactly."""
    h = x.astype(jnp.float32)
    for w_t, b in params[:-1]:
        h = jnp.maximum(h @ w_t + b, 0.0)
    w_t, b = params[-1]
    return h @ w_t + b


def _reference_forward_bf16(params, x):
    """Reference with the kernel's bf16-operand / f32-accumulate scheme."""
    h = x.astype(jnp.float32)
    n = len(params)
    for i, (w_t, b) in enumerate(params):
        h = jnp.dot(h.astype(jnp.bfloat16), w_t.astype(jnp.bfloat16),
                    preferred_element_type=jnp.float32) + b
        if i < n - 1:
            h = jnp.maximum(h, 0.0)
    return h


if __name__ == "__main__":
    key = jax.random.PRNGKey(0)
    key, k_model, k_x = jax.random.split(key, 3)

    # Small MLP consistent with Linear_QNet((in, hidden..., out))
    neuron_tuple = (16, 32, 32, 4)
    batch = 8

    model = LinearQNetPallas(neuron_tuple, k_model)
    x = jax.random.normal(k_x, (batch, neuron_tuple[0]), dtype=jnp.float32)

    out = jax.block_until_ready(model(x))
    assert out.shape == (batch, neuron_tuple[-1])

    # Same-scheme check (bf16 operands, f32 accumulation) -> tight tolerance.
    ref_bf16 = _reference_forward_bf16(model.params, x)
    assert jnp.allclose(out, ref_bf16, atol=5e-3, rtol=5e-3), "bf16-scheme mismatch"

    # Semantics check vs. the pure-f32 PyTorch-equivalent forward (bf16 operands
    # introduce ~1e-2-level error, so tolerance is loosened accordingly).
    ref_f32 = _reference_forward_f32(model.params, x)
    assert jnp.allclose(out, ref_f32, atol=5e-2, rtol=5e-2), "f32-reference mismatch"

    # Acting path (B=1) also runs through the same fused kernel.
    out1 = jax.block_until_ready(model(x[:1]))
    assert out1.shape == (1, neuron_tuple[-1])
    assert jnp.allclose(out1, ref_bf16[:1], atol=5e-3, rtol=5e-3)

    print("KERNEL_OK")
</pallas_src>

<mosaic_0001>
module attributes {stable_mosaic.version = 11 : i64} {
  func.func @_fused_mlp_kernel(%arg0: memref<8x16xf32, #tpu.memory_space<vmem>>, %arg1: memref<3x128x128xbf16, #tpu.memory_space<vmem>>, %arg2: memref<3x1x128xf32, #tpu.memory_space<vmem>>, %arg3: memref<8x4xf32, #tpu.memory_space<vmem>>, %arg4: memref<16x128xf32, #tpu.memory_space<vmem>>) attributes {dimension_semantics = [], scalar_prefetch = 0 : i64, scratch_operands = 1 : i64, tpu.core_type = #tpu.core_type<tc>} {
    %cst = arith.constant 0.000000e+00 : f32
    %0 = vector.broadcast %cst : f32 to vector<16x128xf32>
    %c0 = arith.constant 0 : index
    %c0_0 = arith.constant 0 : index
    %1 = vector.load %arg4[%c0, %c0_0] : memref<16x128xf32, #tpu.memory_space<vmem>>, vector<16x128xf32>
    tpu.vector_store %arg4[%c0, %c0_0], %0 {strides = array<i32>} : memref<16x128xf32, #tpu.memory_space<vmem>>, vector<16x128xf32>,
    %c0_1 = arith.constant 0 : index
    %c0_2 = arith.constant 0 : index
    %2 = vector.load %arg0[%c0_1, %c0_2] : memref<8x16xf32, #tpu.memory_space<vmem>>, vector<8x16xf32>
    %c0_3 = arith.constant 0 : index
    %c0_4 = arith.constant 0 : index
    %3 = vector.load %arg4[%c0_3, %c0_4] : memref<16x128xf32, #tpu.memory_space<vmem>>, vector<8x16xf32>
    tpu.vector_store %arg4[%c0_3, %c0_4], %2 {strides = array<i32>} : memref<16x128xf32, #tpu.memory_space<vmem>>, vector<8x16xf32>,
    %c0_5 = arith.constant 0 : index
    %c0_6 = arith.constant 0 : index
    %4 = vector.load %arg4[%c0_5, %c0_6] : memref<16x128xf32, #tpu.memory_space<vmem>>, vector<16x128xf32>
    %5 = arith.truncf %4 : vector<16x128xf32> to vector<16x128xbf16>
    %c0_7 = arith.constant 0 : index
    %c0_8 = arith.constant 0 : index
    %c0_9 = arith.constant 0 : index
    %6 = vector.load %arg1[%c0_7, %c0_8, %c0_9] : memref<3x128x128xbf16, #tpu.memory_space<vmem>>, vector<1x128x128xbf16>
    %7 = vector.shape_cast %6 : vector<1x128x128xbf16> to vector<128x128xbf16>
    %cst_10 = arith.constant dense<0.000000e+00> : vector<16x128xf32>
    %8 = tpu.matmul %5, %7, %cst_10 {dimension_numbers = #tpu.dot_dimension_numbers<[1], [0], [0], [1], [0, 0, 1, 1], [], []>} : vector<16x128xbf16>, vector<128x128xbf16>, vector<16x128xf32> -> vector<16x128xf32>
    %c0_11 = arith.constant 0 : index
    %c0_12 = arith.constant 0 : index
    %c0_13 = arith.constant 0 : index
    %9 = vector.load %arg2[%c0_11, %c0_12, %c0_13] : memref<3x1x128xf32, #tpu.memory_space<vmem>>, vector<1x1x128xf32>
    %10 = vector.shape_cast %9 : vector<1x1x128xf32> to vector<1x128xf32>
    %11 = vector.broadcast %10 : vector<1x128xf32> to vector<16x128xf32>
    %12 = arith.addf %8, %11 : vector<16x128xf32>
    %cst_14 = arith.constant 0.000000e+00 : f32
    %13 = vector.broadcast %cst_14 : f32 to vector<16x128xf32>
    %14 = arith.maximumf %12, %13 : vector<16x128xf32>
    %15 = arith.truncf %14 : vector<16x128xf32> to vector<16x128xbf16>
    %c1 = arith.constant 1 : index
    %c0_15 = arith.constant 0 : index
    %c0_16 = arith.constant 0 : index
    %16 = vector.load %arg1[%c1, %c0_15, %c0_16] : memref<3x128x128xbf16, #tpu.memory_space<vmem>>, vector<1x128x128xbf16>
    %17 = vector.shape_cast %16 : vector<1x128x128xbf16> to vector<128x128xbf16>
    %cst_17 = arith.constant dense<0.000000e+00> : vector<16x128xf32>
    %18 = tpu.matmul %15, %17, %cst_17 {dimension_numbers = #tpu.dot_dimension_numbers<[1], [0], [0], [1], [0, 0, 1, 1], [], []>} : vector<16x128xbf16>, vector<128x128xbf16>, vector<16x128xf32> -> vector<16x128xf32>
    %c1_18 = arith.constant 1 : index
    %c0_19 = arith.constant 0 : index
    %c0_20 = arith.constant 0 : index
    %19 = vector.load %arg2[%c1_18, %c0_19, %c0_20] : memref<3x1x128xf32, #tpu.memory_space<vmem>>, vector<1x1x128xf32>
    %20 = vector.shape_cast %19 : vector<1x1x128xf32> to vector<1x128xf32>
    %21 = vector.broadcast %20 : vector<1x128xf32> to vector<16x128xf32>
    %22 = arith.addf %18, %21 : vector<16x128xf32>
    %cst_21 = arith.constant 0.000000e+00 : f32
    %23 = vector.broadcast %cst_21 : f32 to vector<16x128xf32>
    %24 = arith.maximumf %22, %23 : vector<16x128xf32>
    %25 = arith.truncf %24 : vector<16x128xf32> to vector<16x128xbf16>
    %c2 = arith.constant 2 : index
    %c0_22 = arith.constant 0 : index
    %c0_23 = arith.constant 0 : index
    %26 = vector.load %arg1[%c2, %c0_22, %c0_23] : memref<3x128x128xbf16, #tpu.memory_space<vmem>>, vector<1x128x128xbf16>
    %27 = vector.shape_cast %26 : vector<1x128x128xbf16> to vector<128x128xbf16>
    %cst_24 = arith.constant dense<0.000000e+00> : vector<16x128xf32>
    %28 = tpu.matmul %25, %27, %cst_24 {dimension_numbers = #tpu.dot_dimension_numbers<[1], [0], [0], [1], [0, 0, 1, 1], [], []>} : vector<16x128xbf16>, vector<128x128xbf16>, vector<16x128xf32> -> vector<16x128xf32>
    %c2_25 = arith.constant 2 : index
    %c0_26 = arith.constant 0 : index
    %c0_27 = arith.constant 0 : index
    %29 = vector.load %arg2[%c2_25, %c0_26, %c0_27] : memref<3x1x128xf32, #tpu.memory_space<vmem>>, vector<1x1x128xf32>
    %30 = vector.shape_cast %29 : vector<1x1x128xf32> to vector<1x128xf32>
    %31 = vector.broadcast %30 : vector<1x128xf32> to vector<16x128xf32>
    %32 = arith.addf %28, %31 : vector<16x128xf32>
    %33 = vector.extract_strided_slice %32 {offsets = [0, 0], sizes = [8, 4], strides = [1, 1]} : vector<16x128xf32> to vector<8x4xf32>
    %c0_28 = arith.constant 0 : index
    %c0_29 = arith.constant 0 : index
    %34 = vector.load %arg3[%c0_28, %c0_29] : memref<8x4xf32, #tpu.memory_space<vmem>>, vector<8x4xf32>
    tpu.vector_store %arg3[%c0_28, %c0_29], %33 {strides = array<i32>} : memref<8x4xf32, #tpu.memory_space<vmem>>, vector<8x4xf32>,
    return
  }
}

</mosaic_0001>

<llo_original>
// kernel: mlp_forward.1
$region0: #{mlp_forward.1}
  #allocation0 [shape = 'u32[]', space=smem, size = 0x4, offset = 0x4, fixed_abs, tag = 'smem constant byte address 0x4 - core index']
  #allocation1 [shape = 'u32[144,128]{1,0:T(1,128)}', space=vmem, size = 0x12000, scoped, tag = 'internal scratch']
  #allocation2 [shape = 'f32[16,128]{1,0:T(8,128)}', space=vmem, size = 0x2000, scoped, tag = 'scratch operand']
  %s0 = inlined_call_operand.hbm [shape: f32[8,16], index: 0, kind: input, shape index: {}]
  %s1 = inlined_call_operand.hbm [shape: bf16[3,128,128], index: 1, kind: input, shape index: {}]
  %s2 = inlined_call_operand.vmem [shape: f32[3,1,128], index: 2, kind: input, shape index: {}]
  %s3 = inlined_call_operand.vmem [shape: f32[8,4], index: 3, kind: output, shape index: {}]
  %s4 = sld [smem:[#allocation0]]
  $region30: #{mlp_forward.1} parent=0
    _
  %s6 = ssub.s32 1, %s4
  %s7 = scalar_select 0, %s6, %s4
  $region1: #{mlp_forward.1} parent=0
    #allocation3 [shape = 'u8[4096]{0}', space=vmem, size = 0x1000, scoped, tag = 'input window, operand 0, single buffered']
    #allocation4 [shape = 's32[1]{0}', space=sflag, size = 0x4, scoped, tag = 'scoped memory for mlp_forward.1']
    #allocation5 [shape = 'u8[98304]{0}', space=vmem, size = 0x18000, scoped, tag = 'input window, operand 1, single buffered']
    #allocation6 [shape = 's32[1]{0}', space=sflag, size = 0x4, scoped, tag = 'scoped memory for mlp_forward.1']
    %8 = vsyncpa [#allocation4], 0
    %9 = vsyncpa [#allocation6], 0
    // Predicated region
    $region2: #{mlp_forward.1} parent=1 // pred_check
      _
    $region3: #{mlp_forward.1} parent=1 // pred_check_branch
      %11 = sbr.rel (0) target = $region5
    $region4: #{mlp_forward.1} parent=1 // pred_region
      %s13 = ssub.s32 128, 128
      %14 = vsyncadd [#allocation4], %s13
      %s16 = sshll.u32 [#allocation3], 4
      %s17 = int_to_ptr.vmem [resolvable:$true] %s16
      %19 = dma.hbm_to_vmem [thread:$0]  %s0, 128, %s17, [#allocation4]
    $region5: #{mlp_forward.1} parent=1 // pred_fallthru
      _
    // Predicated region
    $region6: #{mlp_forward.1} parent=1 // pred_check
      _
    $region7: #{mlp_forward.1} parent=1 // pred_check_branch
      %21 = sbr.rel (0) target = $region9
    $region8: #{mlp_forward.1} parent=1 // pred_region
      %s23 = ssub.s32 3072, 3072
      %24 = vsyncadd [#allocation6], %s23
      %s25 = sshll.u32 [#allocation5], 4
      %s26 = int_to_ptr.vmem [resolvable:$true] %s25
      %31 = dma.hbm_to_vmem [thread:$0]  %s1, 3072, %s26, [#allocation6], 64, 64, 4
    $region9: #{mlp_forward.1} parent=1 // pred_fallthru
      _
    // Predicated region
    $region10: #{mlp_forward.1} parent=1 // pred_check
      _
    $region11: #{mlp_forward.1} parent=1 // pred_check_branch
      %33 = sbr.rel (0) target = $region13
    $region12: #{mlp_forward.1} parent=1 // pred_region
      _
    $region13: #{mlp_forward.1} parent=1 // pred_fallthru
      _
    // Predicated region
    $region14: #{mlp_forward.1} parent=1 // pred_check
      _
    $region15: #{mlp_forward.1} parent=1 // pred_check_branch
      %35 = sbr.rel (0) target = $region17
    $region16: #{mlp_forward.1} parent=1 // pred_region
      %36 = dma.done [#allocation4], 128
    $region17: #{mlp_forward.1} parent=1 // pred_fallthru
      _
    // Predicated region
    $region18: #{mlp_forward.1} parent=1 // pred_check
      _
    $region19: #{mlp_forward.1} parent=1 // pred_check_branch
      %38 = sbr.rel (0) target = $region21
    $region20: #{mlp_forward.1} parent=1 // pred_region
      %39 = dma.done [#allocation6], 3072
    $region21: #{mlp_forward.1} parent=1 // pred_fallthru
      _
    %41 = vst [vmem:[#allocation2] sm:$0xff] 0.0
    %42 = vst [vmem:[#allocation2 + $0x8] sm:$0xff] 0.0
    %v43 = vld [vmem:[#allocation3] sm:$0xff]
    %vm44 = vcmask 130048
    %45 = vst.msk [vmem:[#allocation2] sm:$0xff] %vm44, %v43
    %v46 = vld [vmem:[#allocation2] sm:$0xff]
    %v47 = vld [vmem:[#allocation2 + $0x8] sm:$0xff]
    %v48 = vpack.c.bf16 %v47, %v46
    %v49 = vld [vmem:[#allocation5] sm:$0xf]
    %v50 = vld [vmem:[#allocation5 + $0x4] sm:$0xf]
    %v51 = vld [vmem:[#allocation5 + $0x8] sm:$0xf]
    %v52 = vld [vmem:[#allocation5 + $0xc] sm:$0xf]
    %v53 = vld [vmem:[#allocation5 + $0x10] sm:$0xf]
    %v54 = vld [vmem:[#allocation5 + $0x14] sm:$0xf]
    %v55 = vld [vmem:[#allocation5 + $0x18] sm:$0xf]
    %v56 = vld [vmem:[#allocation5 + $0x1c] sm:$0xf]
    %v57 = vld [vmem:[#allocation5 + $0x20] sm:$0xf]
    %v58 = vld [vmem:[#allocation5 + $0x24] sm:$0xf]
    %v59 = vld [vmem:[#allocation5 + $0x28] sm:$0xf]
    %v60 = vld [vmem:[#allocation5 + $0x2c] sm:$0xf]
    %v61 = vld [vmem:[#allocation5 + $0x30] sm:$0xf]
    %v62 = vld [vmem:[#allocation5 + $0x34] sm:$0xf]
    %v63 = vld [vmem:[#allocation5 + $0x38] sm:$0xf]
    %v64 = vld [vmem:[#allocation5 + $0x3c] sm:$0xf]
    %v65 = vld [vmem:[%s2] sm:$0x1]
    %v67 = vlaneseq
    %v68 = vshrl.u32 %v67, 7
    %v69 = vsub.s32 0, %v68
    %v70 = vrot.slane %v65, %v69
    %v88 = vunpack.c.l.b16 %v49
    %v89 = vunpack.c.l.b16 %v50
    %v90 = vunpack.c.l.b16 %v51
    %v91 = vunpack.c.l.b16 %v52
    %v92 = vunpack.c.l.b16 %v53
    %v93 = vunpack.c.l.b16 %v54
    %v94 = vunpack.c.l.b16 %v55
    %v95 = vunpack.c.l.b16 %v56
    %v96 = vunpack.c.l.b16 %v57
    %v97 = vunpack.c.l.b16 %v58
    %v98 = vunpack.c.l.b16 %v59
    %v99 = vunpack.c.l.b16 %v60
    %v100 = vunpack.c.l.b16 %v61
    %v101 = vunpack.c.l.b16 %v62
    %v102 = vunpack.c.l.b16 %v63
    %v103 = vunpack.c.l.b16 %v64
    %v104 = vpack.c.b16 %v89, %v88
    %v105 = vpack.c.b16 %v91, %v90
    %v106 = vpack.c.b16 %v93, %v92
    %v107 = vpack.c.b16 %v95, %v94
    %v108 = vpack.c.b16 %v97, %v96
    %v109 = vpack.c.b16 %v99, %v98
    %v110 = vpack.c.b16 %v101, %v100
    %v111 = vpack.c.b16 %v103, %v102
    %120 = vmatprep.subr.bf16.mxu0 0
    %121 = vmatpush1.bf16.msra.mxu0 %v104
    %122 = vmatprep.subr.bf16.mxu0 0
    %123 = vmatpush1.bf16.msra.mxu0 %v105
    %124 = vmatprep.subr.bf16.mxu0 0
    %125 = vmatpush1.bf16.msra.mxu0 %v106
    %126 = vmatprep.subr.bf16.mxu0 0
    %127 = vmatpush1.bf16.msra.mxu0 %v107
    %128 = vmatprep.subr.bf16.mxu0 0
    %129 = vmatpush1.bf16.msra.mxu0 %v108
    %130 = vmatprep.subr.bf16.mxu0 0
    %131 = vmatpush1.bf16.msra.mxu0 %v109
    %132 = vmatprep.subr.bf16.mxu0 0
    %133 = vmatpush1.bf16.msra.mxu0 %v110
    %134 = vmatprep.subr.bf16.mxu0 0
    %135 = vmatpush1.bf16.msra.mxu0 %v111
    %136 = vmatprep.subr.bf16.mxu0 0
    %137 = vmatpush1.bf16.msra.mxu0 0
    %138 = vmatprep.subr.bf16.mxu0 0
    %139 = vmatpush1.bf16.msra.mxu0 0
    %140 = vmatprep.subr.bf16.mxu0 0
    %141 = vmatpush1.bf16.msra.mxu0 0
    %142 = vmatprep.subr.bf16.mxu0 0
    %143 = vmatpush1.bf16.msra.mxu0 0
    %144 = vmatprep.subr.bf16.mxu0 0
    %145 = vmatpush1.bf16.msra.mxu0 0
    %146 = vmatprep.subr.bf16.mxu0 0
    %147 = vmatpush1.bf16.msra.mxu0 0
    %148 = vmatprep.subr.bf16.mxu0 0
    %149 = vmatpush1.bf16.msra.mxu0 0
    %150 = vmatprep.subr.bf16.mxu0 0
    %151 = vmatpush1.bf16.msra.mxu0 0
    %152 = vmatprep.mubr.bf16.mxu0 0
    %153 = vmatmul.mubr.bf16.gmra.mrb[0].mxu0 %v48
    %v154 = vpop.f32.mrb[0].mxu0
    %v155 = vadd.f32 %v70, %v154
    %v156 = vpop.f32.mrb[0].mxu0
    %v157 = vpop.f32.mrb[0].mxu0
    %v158 = vadd.f32 %v70, %v157
    %v159 = vpop.f32.mrb[0].mxu0
    %160 = vdwg.mxu0
    %v161 = vmax.f32 %v155, 0.0
    %v162 = vmax.f32 %v158, 0.0
    %v163 = vpack.c.bf16 %v162, %v161
    %s164 = scalar_lea.vmem [#allocation5], 64
    %v165 = vld [vmem:[%s164] sm:$0xf]
    %v166 = vld [vmem:[%s164 + $0x4] sm:$0xf]
    %v167 = vld [vmem:[%s164 + $0x8] sm:$0xf]
    %v168 = vld [vmem:[%s164 + $0xc] sm:$0xf]
    %v169 = vld [vmem:[%s164 + $0x10] sm:$0xf]
    %v170 = vld [vmem:[%s164 + $0x14] sm:$0xf]
    %v171 = vld [vmem:[%s164 + $0x18] sm:$0xf]
    %v172 = vld [vmem:[%s164 + $0x1c] sm:$0xf]
    %v173 = vld [vmem:[%s164 + $0x20] sm:$0xf]
    %v174 = vld [vmem:[%s164 + $0x24] sm:$0xf]
    %v175 = vld [vmem:[%s164 + $0x28] sm:$0xf]
    %v176 = vld [vmem:[%s164 + $0x2c] sm:$0xf]
    %v177 = vld [vmem:[%s164 + $0x30] sm:$0xf]
    %v178 = vld [vmem:[%s164 + $0x34] sm:$0xf]
    %v179 = vld [vmem:[%s164 + $0x38] sm:$0xf]
    %v180 = vld [vmem:[%s164 + $0x3c] sm:$0xf]
    %s181 = scalar_lea.vmem %s2, 1
    %v182 = vld [vmem:[%s181] sm:$0x1]
    %v184 = vlaneseq
    %v185 = vshrl.u32 %v184, 7
    %v186 = vsub.s32 0, %v185
    %v187 = vrot.slane %v182, %v186
    %v205 = vunpack.c.l.b16 %v165
    %v206 = vunpack.c.l.b16 %v166
    %v207 = vunpack.c.l.b16 %v167
    %v208 = vunpack.c.l.b16 %v168
    %v209 = vunpack.c.l.b16 %v169
    %v210 = vunpack.c.l.b16 %v170
    %v211 = vunpack.c.l.b16 %v171
    %v212 = vunpack.c.l.b16 %v172
    %v213 = vunpack.c.l.b16 %v173
    %v214 = vunpack.c.l.b16 %v174
    %v215 = vunpack.c.l.b16 %v175
    %v216 = vunpack.c.l.b16 %v176
    %v217 = vunpack.c.l.b16 %v177
    %v218 = vunpack.c.l.b16 %v178
    %v219 = vunpack.c.l.b16 %v179
    %v220 = vunpack.c.l.b16 %v180
    %v221 = vpack.c.b16 %v206, %v205
    %v222 = vpack.c.b16 %v208, %v207
    %v223 = vpack.c.b16 %v210, %v209
    %v224 = vpack.c.b16 %v212, %v211
    %v225 = vpack.c.b16 %v214, %v213
    %v226 = vpack.c.b16 %v216, %v215
    %v227 = vpack.c.b16 %v218, %v217
    %v228 = vpack.c.b16 %v220, %v219
    %237 = vmatprep.subr.bf16.mxu0 0
    %238 = vmatpush1.bf16.msra.mxu0 %v221
    %239 = vmatprep.subr.bf16.mxu0 0
    %240 = vmatpush1.bf16.msra.mxu0 %v222
    %241 = vmatprep.subr.bf16.mxu0 0
    %242 = vmatpush1.bf16.msra.mxu0 %v223
    %243 = vmatprep.subr.bf16.mxu0 0
    %244 = vmatpush1.bf16.msra.mxu0 %v224
    %245 = vmatprep.subr.bf16.mxu0 0
    %246 = vmatpush1.bf16.msra.mxu0 %v225
    %247 = vmatprep.subr.bf16.mxu0 0
    %248 = vmatpush1.bf16.msra.mxu0 %v226
    %249 = vmatprep.subr.bf16.mxu0 0
    %250 = vmatpush1.bf16.msra.mxu0 %v227
    %251 = vmatprep.subr.bf16.mxu0 0
    %252 = vmatpush1.bf16.msra.mxu0 %v228
    %253 = vmatprep.subr.bf16.mxu0 0
    %254 = vmatpush1.bf16.msra.mxu0 0
    %255 = vmatprep.subr.bf16.mxu0 0
    %256 = vmatpush1.bf16.msra.mxu0 0
    %257 = vmatprep.subr.bf16.mxu0 0
    %258 = vmatpush1.bf16.msra.mxu0 0
    %259 = vmatprep.subr.bf16.mxu0 0
    %260 = vmatpush1.bf16.msra.mxu0 0
    %261 = vmatprep.subr.bf16.mxu0 0
    %262 = vmatpush1.bf16.msra.mxu0 0
    %263 = vmatprep.subr.bf16.mxu0 0
    %264 = vmatpush1.bf16.msra.mxu0 0
    %265 = vmatprep.subr.bf16.mxu0 0
    %266 = vmatpush1.bf16.msra.mxu0 0
    %267 = vmatprep.subr.bf16.mxu0 0
    %268 = vmatpush1.bf16.msra.mxu0 0
    %269 = vmatprep.mubr.bf16.mxu0 0
    %270 = vmatmul.mubr.bf16.gmra.mrb[0].mxu0 %v163
    %v271 = vpop.f32.mrb[0].mxu0
    %v272 = vadd.f32 %v187, %v271
    %v273 = vpop.f32.mrb[0].mxu0
    %v274 = vpop.f32.mrb[0].mxu0
    %v275 = vadd.f32 %v187, %v274
    %v276 = vpop.f32.mrb[0].mxu0
    %277 = vdwg.mxu0
    %v278 = vmax.f32 %v272, 0.0
    %v279 = vmax.f32 %v275, 0.0
    %v280 = vpack.c.bf16 %v279, %v278
    %s281 = scalar_lea.vmem [#allocation5], 128
    %v282 = vld [vmem:[%s281] sm:$0xf]
    %v283 = vld [vmem:[%s281 + $0x4] sm:$0xf]
    %v284 = vld [vmem:[%s281 + $0x8] sm:$0xf]
    %v285 = vld [vmem:[%s281 + $0xc] sm:$0xf]
    %v286 = vld [vmem:[%s281 + $0x10] sm:$0xf]
    %v287 = vld [vmem:[%s281 + $0x14] sm:$0xf]
    %v288 = vld [vmem:[%s281 + $0x18] sm:$0xf]
    %v289 = vld [vmem:[%s281 + $0x1c] sm:$0xf]
    %v290 = vld [vmem:[%s281 + $0x20] sm:$0xf]
    %v291 = vld [vmem:[%s281 + $0x24] sm:$0xf]
    %v292 = vld [vmem:[%s281 + $0x28] sm:$0xf]
    %v293 = vld [vmem:[%s281 + $0x2c] sm:$0xf]
    %v294 = vld [vmem:[%s281 + $0x30] sm:$0xf]
    %v295 = vld [vmem:[%s281 + $0x34] sm:$0xf]
    %v296 = vld [vmem:[%s281 + $0x38] sm:$0xf]
    %v297 = vld [vmem:[%s281 + $0x3c] sm:$0xf]
    %s298 = scalar_lea.vmem %s2, 2
    %v299 = vld [vmem:[%s298] sm:$0x1]
    %v301 = vlaneseq
    %v302 = vshrl.u32 %v301, 7
    %v303 = vsub.s32 0, %v302
    %v304 = vrot.slane %v299, %v303
    %v322 = vunpack.c.l.b16 %v282
    %v323 = vunpack.c.l.b16 %v283
    %v324 = vunpack.c.l.b16 %v284
    %v325 = vunpack.c.l.b16 %v285
    %v326 = vunpack.c.l.b16 %v286
    %v327 = vunpack.c.l.b16 %v287
    %v328 = vunpack.c.l.b16 %v288
    %v329 = vunpack.c.l.b16 %v289
    %v330 = vunpack.c.l.b16 %v290
    %v331 = vunpack.c.l.b16 %v291
    %v332 = vunpack.c.l.b16 %v292
    %v333 = vunpack.c.l.b16 %v293
    %v334 = vunpack.c.l.b16 %v294
    %v335 = vunpack.c.l.b16 %v295
    %v336 = vunpack.c.l.b16 %v296
    %v337 = vunpack.c.l.b16 %v297
    %v338 = vpack.c.b16 %v323, %v322
    %v339 = vpack.c.b16 %v325, %v324
    %v340 = vpack.c.b16 %v327, %v326
    %v341 = vpack.c.b16 %v329, %v328
    %v342 = vpack.c.b16 %v331, %v330
    %v343 = vpack.c.b16 %v333, %v332
    %v344 = vpack.c.b16 %v335, %v334
    %v345 = vpack.c.b16 %v337, %v336
    %354 = vmatprep.subr.bf16.mxu0 0
    %355 = vmatpush1.bf16.msra.mxu0 %v338
    %356 = vmatprep.subr.bf16.mxu0 0
    %357 = vmatpush1.bf16.msra.mxu0 %v339
    %358 = vmatprep.subr.bf16.mxu0 0
    %359 = vmatpush1.bf16.msra.mxu0 %v340
    %360 = vmatprep.subr.bf16.mxu0 0
    %361 = vmatpush1.bf16.msra.mxu0 %v341
    %362 = vmatprep.subr.bf16.mxu0 0
    %363 = vmatpush1.bf16.msra.mxu0 %v342
    %364 = vmatprep.subr.bf16.mxu0 0
    %365 = vmatpush1.bf16.msra.mxu0 %v343
    %366 = vmatprep.subr.bf16.mxu0 0
    %367 = vmatpush1.bf16.msra.mxu0 %v344
    %368 = vmatprep.subr.bf16.mxu0 0
    %369 = vmatpush1.bf16.msra.mxu0 %v345
    %370 = vmatprep.subr.bf16.mxu0 0
    %371 = vmatpush1.bf16.msra.mxu0 0
    %372 = vmatprep.subr.bf16.mxu0 0
    %373 = vmatpush1.bf16.msra.mxu0 0
    %374 = vmatprep.subr.bf16.mxu0 0
    %375 = vmatpush1.bf16.msra.mxu0 0
    %376 = vmatprep.subr.bf16.mxu0 0
    %377 = vmatpush1.bf16.msra.mxu0 0
    %378 = vmatprep.subr.bf16.mxu0 0
    %379 = vmatpush1.bf16.msra.mxu0 0
    %380 = vmatprep.subr.bf16.mxu0 0
    %381 = vmatpush1.bf16.msra.mxu0 0
    %382 = vmatprep.subr.bf16.mxu0 0
    %383 = vmatpush1.bf16.msra.mxu0 0
    %384 = vmatprep.subr.bf16.mxu0 0
    %385 = vmatpush1.bf16.msra.mxu0 0
    %386 = vmatprep.mubr.bf16.mxu0 0
    %387 = vmatmul.mubr.bf16.gmra.mrb[0].mxu0 %v280
    %v388 = vpop.f32.mrb[0].mxu0
    %v389 = vadd.f32 %v304, %v388
    %v390 = vpop.f32.mrb[0].mxu0
    %v391 = vpop.f32.mrb[0].mxu0
    %v392 = vpop.f32.mrb[0].mxu0
    %393 = vdwg.mxu0
    %vm394 = vcmask 31744
    %395 = vst.msk [vmem:[%s3] sm:$0xff] %vm394, %v389
    // Predicated region
    $region22: #{mlp_forward.1} parent=1 // pred_check
      _
    $region23: #{mlp_forward.1} parent=1 // pred_check_branch
      %397 = sbr.rel (0) target = $region25
    $region24: #{mlp_forward.1} parent=1 // pred_region
      _
    $region25: #{mlp_forward.1} parent=1 // pred_fallthru
      _
    // Predicated region
    $region26: #{mlp_forward.1} parent=1 // pred_check
      _
    $region27: #{mlp_forward.1} parent=1 // pred_check_branch
      %399 = sbr.rel (0) target = $region29
    $region28: #{mlp_forward.1} parent=1 // pred_region
      _
    $region29: #{mlp_forward.1} parent=1 // pred_fallthru
      _
    %400 = vsyncpa [#allocation4], 1
    %401 = vsyncpa [#allocation6], 1

</llo_original>
